<compile_context>
chip_gen: v7x
topology: tpu7x:2x2x1
jax: 0.10.0
libtpu: 0.0.40
codegen_flags: <defaults>
</compile_context>

<pallas_src>
import functools

import jax
import jax.numpy as jnp
from jax import lax
from jax.experimental import pallas as pl
from jax.experimental.pallas import tpu as pltpu


def _silu(x):
    return x * jax.nn.sigmoid(x)


def _im2col_conv(x2d, w_flat, bias_bcast, masks, shifts):
    """3x3 'same' conv on a lane-dense flattened slab as one im2col matmul.

    x2d:        (Cin, HW) f32 activations
    w_flat:     (O, 9*Cin) bf16 weights, column index = k*Cin + c, tap k = kh*3 + kw
    bias_bcast: (O, HW) f32 (pre-broadcast, hoisted)
    masks:      (9, 1, HW) f32 multiplicative boundary masks (precomputed)
    shifts:     tuple of 9 static non-negative lane shifts (one per tap)
    returns     (O, HW) f32
    """
    taps = []
    for k, s in enumerate(shifts):
        if s == 0:
            taps.append(x2d)                      # center tap: no shift, no mask
        else:
            taps.append(pltpu.roll(x2d, s, axis=1) * masks[k])
    stacked = jnp.concatenate(taps, axis=0).astype(jnp.bfloat16)   # (9*Cin, HW)
    return jnp.dot(w_flat, stacked, preferred_element_type=jnp.float32) + bias_bcast


def _myblock_kernel(x_ref, g_ref, beta_ref, mask_ref,
                    w1_ref, b1_ref, w2_ref, b2_ref, o_ref,
                    *, eps, H, W, nb):
    HW = H * W
    C = g_ref.shape[0]
    O = o_ref.shape[1]

    # Static lane shifts per tap, k = (dh+1)*3 + (dw+1) = kh*3 + kw.
    shifts = tuple((-(dh * W + dw)) % HW
                   for dh in (-1, 0, 1) for dw in (-1, 0, 1))

    # Hoisted once-per-invocation loads / broadcasts, shared by all nb samples.
    gamma = g_ref[...]                                   # (C, HW) f32
    beta = beta_ref[...]                                 # (C, HW) f32
    masks = mask_ref[...]                                # (9, 1, HW) f32
    w1 = w1_ref[...]                                     # (O, 9*C) bf16
    w2 = w2_ref[...]                                     # (O, 9*O) bf16
    b1b = jnp.broadcast_to(b1_ref[...], (O, HW))         # (O, HW) f32
    b2b = jnp.broadcast_to(b2_ref[...], (O, HW))         # (O, HW) f32

    inv_n = 1.0 / (C * HW)

    def body(n, carry):
        x = x_ref[n]                                     # (C, HW) f32

        # LayerNorm over (C, H, W): one-pass stats, clamped variance.
        s1 = jnp.sum(x)
        s2 = jnp.sum(x * x)
        mean = s1 * inv_n
        var = jnp.maximum(s2 * inv_n - mean * mean, 0.0)
        inv_std = lax.rsqrt(var + eps)
        xn = (x - mean) * inv_std * gamma + beta

        h = _silu(_im2col_conv(xn, w1, b1b, masks, shifts))   # (O, HW) f32
        h = _silu(_im2col_conv(h, w2, b2b, masks, shifts))    # (O, HW) f32
        o_ref[n] = h.astype(o_ref.dtype)
        return carry

    lax.fori_loop(0, nb, body, 0, unroll=nb <= 8)


def myblock_forward(x, gamma, beta, w1, b1, w2, b2, eps=1e-5, nb=None):
    """x: (N, C, H, W) float32. Returns (N, O, H, W) float32."""
    N, C, H, W = x.shape
    O = w1.shape[0]
    HW = H * W
    if nb is None:
        nb = N                    # demo sizes: one grid step carries the whole batch
    assert N % nb == 0, "batch must be divisible by samples-per-step"

    # Lane-dense flattening (reshape back outside the kernel).
    x_flat = x.reshape(N, C, HW)
    g_flat = gamma.reshape(C, HW)
    beta_flat = beta.reshape(C, HW)

    # im2col weights: (O, Cin, 3, 3) -> (O, 3, 3, Cin) -> (O, 9*Cin), col = k*Cin + c.
    w1k = jnp.transpose(w1, (0, 2, 3, 1)).reshape(O, 9 * C).astype(jnp.bfloat16)
    w2k = jnp.transpose(w2, (0, 2, 3, 1)).reshape(O, 9 * O).astype(jnp.bfloat16)
    b1k = b1.reshape(O, 1).astype(jnp.float32)
    b2k = b2.reshape(O, 1).astype(jnp.float32)

    # Precomputed boundary masks for the 9 taps, tap k = (dh+1)*3 + (dw+1).
    pos = jnp.arange(HW, dtype=jnp.int32)
    row = pos // W
    col = pos % W
    mask_list = []
    for dh in (-1, 0, 1):
        for dw in (-1, 0, 1):
            ok = ((row + dh >= 0) & (row + dh < H) &
                  (col + dw >= 0) & (col + dw < W))
            mask_list.append(ok)
    mask_arr = jnp.stack(mask_list).astype(jnp.float32).reshape(9, 1, HW)

    kernel = functools.partial(_myblock_kernel, eps=eps, H=H, W=W, nb=nb)

    out_flat = pl.pallas_call(
        kernel,
        out_shape=jax.ShapeDtypeStruct((N, O, HW), x.dtype),
        grid_spec=pltpu.PrefetchScalarGridSpec(
            num_scalar_prefetch=0,
            grid=(N // nb,),
            in_specs=[
                pl.BlockSpec((nb, C, HW), lambda b: (b, 0, 0)),   # x
                pl.BlockSpec((C, HW), lambda b: (0, 0)),          # gamma
                pl.BlockSpec((C, HW), lambda b: (0, 0)),          # beta
                pl.BlockSpec((9, 1, HW), lambda b: (0, 0, 0)),    # boundary masks
                pl.BlockSpec((O, 9 * C), lambda b: (0, 0)),       # w1 im2col (bf16)
                pl.BlockSpec((O, 1), lambda b: (0, 0)),           # b1
                pl.BlockSpec((O, 9 * O), lambda b: (0, 0)),       # w2 im2col (bf16)
                pl.BlockSpec((O, 1), lambda b: (0, 0)),           # b2
            ],
            out_specs=pl.BlockSpec((nb, O, HW), lambda b: (b, 0, 0)),
        ),
        compiler_params=pltpu.CompilerParams(
            dimension_semantics=("parallel",)),
    )(x_flat, g_flat, beta_flat, mask_arr, w1k, b1k, w2k, b2k)

    return out_flat.reshape(N, O, H, W)


def myblock_reference(x, gamma, beta, w1, b1, w2, b2, eps=1e-5):
    """Pure-JAX f32 reference replicating the PyTorch module semantics."""
    mean = x.mean(axis=(1, 2, 3), keepdims=True)
    var = ((x - mean) ** 2).mean(axis=(1, 2, 3), keepdims=True)
    xn = (x - mean) / jnp.sqrt(var + eps) * gamma[None] + beta[None]

    def conv(y, w, b):
        out = jax.lax.conv_general_dilated(
            y, w, window_strides=(1, 1), padding=((1, 1), (1, 1)),
            dimension_numbers=("NCHW", "OIHW", "NCHW"))
        return out + b[None, :, None, None]

    h = conv(xn, w1, b1)
    h = h * jax.nn.sigmoid(h)
    h = conv(h, w2, b2)
    h = h * jax.nn.sigmoid(h)
    return h


if __name__ == "__main__":
    # Small shapes consistent with the module: shape=(C,H,W), in_c=C, out_c=O.
    N, C, H, W = 2, 4, 16, 16
    O = 8

    key = jax.random.PRNGKey(0)
    kx, kw1, kb1, kw2, kb2 = jax.random.split(key, 5)

    x = jax.random.normal(kx, (N, C, H, W), dtype=jnp.float32)

    # LayerNorm params (PyTorch default init: weight=1, bias=0)
    gamma = jnp.ones((C, H, W), jnp.float32)
    beta = jnp.zeros((C, H, W), jnp.float32)

    # Conv params (deterministic synthetic init)
    w1 = 0.1 * jax.random.normal(kw1, (O, C, 3, 3), dtype=jnp.float32)
    b1 = 0.1 * jax.random.normal(kb1, (O,), dtype=jnp.float32)
    w2 = 0.1 * jax.random.normal(kw2, (O, O, 3, 3), dtype=jnp.float32)
    b2 = 0.1 * jax.random.normal(kb2, (O,), dtype=jnp.float32)

    out = jax.block_until_ready(myblock_forward(x, gamma, beta, w1, b1, w2, b2))
    ref = jax.block_until_ready(myblock_reference(x, gamma, beta, w1, b1, w2, b2))

    assert out.shape == (N, O, H, W)
    # bf16 MXU operands (f32 accumulation) vs f32 reference -> loosened tolerance.
    max_err = float(jnp.max(jnp.abs(out - ref)))
    assert jnp.allclose(out, ref, rtol=2e-2, atol=2e-2), max_err

    print("KERNEL_OK")
</pallas_src>

<mosaic_0001>
module attributes {stable_mosaic.version = 11 : i64} {
  func.func @_myblock_kernel(%arg0: i32, %arg1: memref<2x4x256xf32, #tpu.memory_space<vmem>>, %arg2: memref<4x256xf32, #tpu.memory_space<vmem>>, %arg3: memref<4x256xf32, #tpu.memory_space<vmem>>, %arg4: memref<9x1x256xf32, #tpu.memory_space<vmem>>, %arg5: memref<8x36xbf16, #tpu.memory_space<vmem>>, %arg6: memref<8x1xf32, #tpu.memory_space<vmem>>, %arg7: memref<8x72xbf16, #tpu.memory_space<vmem>>, %arg8: memref<8x1xf32, #tpu.memory_space<vmem>>, %arg9: memref<2x8x256xf32, #tpu.memory_space<vmem>>) attributes {dimension_semantics = [#tpu.dimension_semantics<parallel>], iteration_bounds = array<i64: 1>, scalar_prefetch = 0 : i64, scratch_operands = 0 : i64, tpu.core_type = #tpu.core_type<tc>, window_params = [{transform_indices = @transform_0, window_bounds = array<i64: 2, 4, 256>}, {pipeline_mode = #tpu.pipeline_mode<synchronous>, transform_indices = @transform_1, window_bounds = array<i64: 4, 256>}, {pipeline_mode = #tpu.pipeline_mode<synchronous>, transform_indices = @transform_2, window_bounds = array<i64: 4, 256>}, {pipeline_mode = #tpu.pipeline_mode<synchronous>, transform_indices = @transform_3, window_bounds = array<i64: 9, 1, 256>}, {pipeline_mode = #tpu.pipeline_mode<synchronous>, transform_indices = @transform_4, window_bounds = array<i64: 8, 36>}, {pipeline_mode = #tpu.pipeline_mode<synchronous>, transform_indices = @transform_5, window_bounds = array<i64: 8, 1>}, {pipeline_mode = #tpu.pipeline_mode<synchronous>, transform_indices = @transform_6, window_bounds = array<i64: 8, 72>}, {pipeline_mode = #tpu.pipeline_mode<synchronous>, transform_indices = @transform_7, window_bounds = array<i64: 8, 1>}, {transform_indices = @transform_8, window_bounds = array<i64: 2, 8, 256>}]} {
    %c0 = arith.constant 0 : index
    %c0_0 = arith.constant 0 : index
    %0 = vector.load %arg2[%c0, %c0_0] : memref<4x256xf32, #tpu.memory_space<vmem>>, vector<4x256xf32>
    %c0_1 = arith.constant 0 : index
    %c0_2 = arith.constant 0 : index
    %1 = vector.load %arg3[%c0_1, %c0_2] : memref<4x256xf32, #tpu.memory_space<vmem>>, vector<4x256xf32>
    %c0_3 = arith.constant 0 : index
    %c0_4 = arith.constant 0 : index
    %c0_5 = arith.constant 0 : index
    %2 = vector.load %arg4[%c0_3, %c0_4, %c0_5] : memref<9x1x256xf32, #tpu.memory_space<vmem>>, vector<9x1x256xf32>
    %c0_6 = arith.constant 0 : index
    %c0_7 = arith.constant 0 : index
    %3 = vector.load %arg5[%c0_6, %c0_7] : memref<8x36xbf16, #tpu.memory_space<vmem>>, vector<8x36xbf16>
    %c0_8 = arith.constant 0 : index
    %c0_9 = arith.constant 0 : index
    %4 = vector.load %arg7[%c0_8, %c0_9] : memref<8x72xbf16, #tpu.memory_space<vmem>>, vector<8x72xbf16>
    %c0_10 = arith.constant 0 : index
    %c0_11 = arith.constant 0 : index
    %5 = vector.load %arg6[%c0_10, %c0_11] : memref<8x1xf32, #tpu.memory_space<vmem>>, vector<8x1xf32>
    %6 = vector.shape_cast %5 : vector<8x1xf32> to vector<8x1xf32>
    %7 = vector.broadcast %6 : vector<8x1xf32> to vector<8x256xf32>
    %c0_12 = arith.constant 0 : index
    %c0_13 = arith.constant 0 : index
    %8 = vector.load %arg8[%c0_12, %c0_13] : memref<8x1xf32, #tpu.memory_space<vmem>>, vector<8x1xf32>
    %9 = vector.shape_cast %8 : vector<8x1xf32> to vector<8x1xf32>
    %10 = vector.broadcast %9 : vector<8x1xf32> to vector<8x256xf32>
    %c0_i32 = arith.constant 0 : i32
    %11 = arith.index_cast %c0_i32 : i32 to index
    %c0_14 = arith.constant 0 : index
    %c0_15 = arith.constant 0 : index
    %12 = vector.load %arg1[%11, %c0_14, %c0_15] : memref<2x4x256xf32, #tpu.memory_space<vmem>>, vector<1x4x256xf32>
    %13 = vector.shape_cast %12 : vector<1x4x256xf32> to vector<4x256xf32>
    %14 = vector.shape_cast %13 : vector<4x256xf32> to vector<1x4x256xf32>
    %cst = arith.constant dense<0.000000e+00> : vector<1xf32>
    %15 = vector.multi_reduction <add>, %14, %cst [1, 2] : vector<1x4x256xf32> to vector<1xf32>
    %16 = vector.shape_cast %15 : vector<1xf32> to vector<1x1x1xf32>
    %17 = vector.extract %16[0, 0, 0] : f32 from vector<1x1x1xf32>
    %18 = arith.mulf %13, %13 : vector<4x256xf32>
    %19 = vector.shape_cast %18 : vector<4x256xf32> to vector<1x4x256xf32>
    %cst_16 = arith.constant dense<0.000000e+00> : vector<1xf32>
    %20 = vector.multi_reduction <add>, %19, %cst_16 [1, 2] : vector<1x4x256xf32> to vector<1xf32>
    %21 = vector.shape_cast %20 : vector<1xf32> to vector<1x1x1xf32>
    %22 = vector.extract %21[0, 0, 0] : f32 from vector<1x1x1xf32>
    %cst_17 = arith.constant 9.765625E-4 : f32
    %23 = arith.mulf %17, %cst_17 : f32
    %cst_18 = arith.constant 9.765625E-4 : f32
    %24 = arith.mulf %22, %cst_18 : f32
    %25 = arith.mulf %23, %23 : f32
    %26 = arith.subf %24, %25 : f32
    %cst_19 = arith.constant 0.000000e+00 : f32
    %27 = arith.maximumf %26, %cst_19 : f32
    %cst_20 = arith.constant 9.99999974E-6 : f32
    %28 = arith.addf %27, %cst_20 : f32
    %29 = math.rsqrt %28 : f32
    %30 = vector.broadcast %23 : f32 to vector<4x256xf32>
    %31 = arith.subf %13, %30 : vector<4x256xf32>
    %32 = vector.broadcast %29 : f32 to vector<4x256xf32>
    %33 = arith.mulf %31, %32 : vector<4x256xf32>
    %34 = arith.mulf %33, %0 : vector<4x256xf32>
    %35 = arith.addf %34, %1 : vector<4x256xf32>
    %c17_i32 = arith.constant 17 : i32
    %36 = tpu.dynamic_rotate %35 by %c17_i32 dim 1 : vector<4x256xf32>, i32 -> vector<4x256xf32>
    %37 = vector.extract_strided_slice %2 {offsets = [0, 0, 0], sizes = [1, 1, 256], strides = [1, 1, 1]} : vector<9x1x256xf32> to vector<1x1x256xf32>
    %38 = vector.shape_cast %37 : vector<1x1x256xf32> to vector<1x256xf32>
    %39 = vector.broadcast %38 : vector<1x256xf32> to vector<4x256xf32>
    %40 = arith.mulf %36, %39 : vector<4x256xf32>
    %c16_i32 = arith.constant 16 : i32
    %41 = tpu.dynamic_rotate %35 by %c16_i32 dim 1 : vector<4x256xf32>, i32 -> vector<4x256xf32>
    %42 = vector.extract_strided_slice %2 {offsets = [1, 0, 0], sizes = [1, 1, 256], strides = [1, 1, 1]} : vector<9x1x256xf32> to vector<1x1x256xf32>
    %43 = vector.shape_cast %42 : vector<1x1x256xf32> to vector<1x256xf32>
    %44 = vector.broadcast %43 : vector<1x256xf32> to vector<4x256xf32>
    %45 = arith.mulf %41, %44 : vector<4x256xf32>
    %c15_i32 = arith.constant 15 : i32
    %46 = tpu.dynamic_rotate %35 by %c15_i32 dim 1 : vector<4x256xf32>, i32 -> vector<4x256xf32>
    %47 = vector.extract_strided_slice %2 {offsets = [2, 0, 0], sizes = [1, 1, 256], strides = [1, 1, 1]} : vector<9x1x256xf32> to vector<1x1x256xf32>
    %48 = vector.shape_cast %47 : vector<1x1x256xf32> to vector<1x256xf32>
    %49 = vector.broadcast %48 : vector<1x256xf32> to vector<4x256xf32>
    %50 = arith.mulf %46, %49 : vector<4x256xf32>
    %c1_i32 = arith.constant 1 : i32
    %51 = tpu.dynamic_rotate %35 by %c1_i32 dim 1 : vector<4x256xf32>, i32 -> vector<4x256xf32>
    %52 = vector.extract_strided_slice %2 {offsets = [3, 0, 0], sizes = [1, 1, 256], strides = [1, 1, 1]} : vector<9x1x256xf32> to vector<1x1x256xf32>
    %53 = vector.shape_cast %52 : vector<1x1x256xf32> to vector<1x256xf32>
    %54 = vector.broadcast %53 : vector<1x256xf32> to vector<4x256xf32>
    %55 = arith.mulf %51, %54 : vector<4x256xf32>
    %c255_i32 = arith.constant 255 : i32
    %56 = tpu.dynamic_rotate %35 by %c255_i32 dim 1 : vector<4x256xf32>, i32 -> vector<4x256xf32>
    %57 = vector.extract_strided_slice %2 {offsets = [5, 0, 0], sizes = [1, 1, 256], strides = [1, 1, 1]} : vector<9x1x256xf32> to vector<1x1x256xf32>
    %58 = vector.shape_cast %57 : vector<1x1x256xf32> to vector<1x256xf32>
    %59 = vector.broadcast %58 : vector<1x256xf32> to vector<4x256xf32>
    %60 = arith.mulf %56, %59 : vector<4x256xf32>
    %c241_i32 = arith.constant 241 : i32
    %61 = tpu.dynamic_rotate %35 by %c241_i32 dim 1 : vector<4x256xf32>, i32 -> vector<4x256xf32>
    %62 = vector.extract_strided_slice %2 {offsets = [6, 0, 0], sizes = [1, 1, 256], strides = [1, 1, 1]} : vector<9x1x256xf32> to vector<1x1x256xf32>
    %63 = vector.shape_cast %62 : vector<1x1x256xf32> to vector<1x256xf32>
    %64 = vector.broadcast %63 : vector<1x256xf32> to vector<4x256xf32>
    %65 = arith.mulf %61, %64 : vector<4x256xf32>
    %c240_i32 = arith.constant 240 : i32
    %66 = tpu.dynamic_rotate %35 by %c240_i32 dim 1 : vector<4x256xf32>, i32 -> vector<4x256xf32>
    %67 = vector.extract_strided_slice %2 {offsets = [7, 0, 0], sizes = [1, 1, 256], strides = [1, 1, 1]} : vector<9x1x256xf32> to vector<1x1x256xf32>
    %68 = vector.shape_cast %67 : vector<1x1x256xf32> to vector<1x256xf32>
    %69 = vector.broadcast %68 : vector<1x256xf32> to vector<4x256xf32>
    %70 = arith.mulf %66, %69 : vector<4x256xf32>
    %c239_i32 = arith.constant 239 : i32
    %71 = tpu.dynamic_rotate %35 by %c239_i32 dim 1 : vector<4x256xf32>, i32 -> vector<4x256xf32>
    %72 = vector.extract_strided_slice %2 {offsets = [8, 0, 0], sizes = [1, 1, 256], strides = [1, 1, 1]} : vector<9x1x256xf32> to vector<1x1x256xf32>
    %73 = vector.shape_cast %72 : vector<1x1x256xf32> to vector<1x256xf32>
    %74 = vector.broadcast %73 : vector<1x256xf32> to vector<4x256xf32>
    %75 = arith.mulf %71, %74 : vector<4x256xf32>
    %76 = tpu.concatenate %40, %45, %50, %55, %35, %60, %65, %70, %75 in 0 : vector<4x256xf32>, vector<4x256xf32>, vector<4x256xf32>, vector<4x256xf32>, vector<4x256xf32>, vector<4x256xf32>, vector<4x256xf32>, vector<4x256xf32>, vector<4x256xf32> -> vector<36x256xf32>
    %77 = arith.truncf %76 : vector<36x256xf32> to vector<36x256xbf16>
    %cst_21 = arith.constant dense<0.000000e+00> : vector<8x256xf32>
    %78 = tpu.matmul %3, %77, %cst_21 {dimension_numbers = #tpu.dot_dimension_numbers<[1], [0], [0], [1], [0, 0, 1, 1], [], []>} : vector<8x36xbf16>, vector<36x256xbf16>, vector<8x256xf32> -> vector<8x256xf32>
    %79 = arith.addf %78, %7 : vector<8x256xf32>
    %80 = arith.negf %79 : vector<8x256xf32>
    %81 = math.exp %80 : vector<8x256xf32>
    %cst_22 = arith.constant 1.000000e+00 : f32
    %82 = vector.broadcast %cst_22 : f32 to vector<8x256xf32>
    %83 = arith.addf %82, %81 : vector<8x256xf32>
    %84 = arith.divf %82, %83 : vector<8x256xf32>
    %85 = arith.mulf %79, %84 : vector<8x256xf32>
    %c17_i32_23 = arith.constant 17 : i32
    %86 = tpu.dynamic_rotate %85 by %c17_i32_23 dim 1 : vector<8x256xf32>, i32 -> vector<8x256xf32>
    %87 = vector.extract_strided_slice %2 {offsets = [0, 0, 0], sizes = [1, 1, 256], strides = [1, 1, 1]} : vector<9x1x256xf32> to vector<1x1x256xf32>
    %88 = vector.shape_cast %87 : vector<1x1x256xf32> to vector<1x256xf32>
    %89 = vector.broadcast %88 : vector<1x256xf32> to vector<8x256xf32>
    %90 = arith.mulf %86, %89 : vector<8x256xf32>
    %c16_i32_24 = arith.constant 16 : i32
    %91 = tpu.dynamic_rotate %85 by %c16_i32_24 dim 1 : vector<8x256xf32>, i32 -> vector<8x256xf32>
    %92 = vector.extract_strided_slice %2 {offsets = [1, 0, 0], sizes = [1, 1, 256], strides = [1, 1, 1]} : vector<9x1x256xf32> to vector<1x1x256xf32>
    %93 = vector.shape_cast %92 : vector<1x1x256xf32> to vector<1x256xf32>
    %94 = vector.broadcast %93 : vector<1x256xf32> to vector<8x256xf32>
    %95 = arith.mulf %91, %94 : vector<8x256xf32>
    %c15_i32_25 = arith.constant 15 : i32
    %96 = tpu.dynamic_rotate %85 by %c15_i32_25 dim 1 : vector<8x256xf32>, i32 -> vector<8x256xf32>
    %97 = vector.extract_strided_slice %2 {offsets = [2, 0, 0], sizes = [1, 1, 256], strides = [1, 1, 1]} : vector<9x1x256xf32> to vector<1x1x256xf32>
    %98 = vector.shape_cast %97 : vector<1x1x256xf32> to vector<1x256xf32>
    %99 = vector.broadcast %98 : vector<1x256xf32> to vector<8x256xf32>
    %100 = arith.mulf %96, %99 : vector<8x256xf32>
    %c1_i32_26 = arith.constant 1 : i32
    %101 = tpu.dynamic_rotate %85 by %c1_i32_26 dim 1 : vector<8x256xf32>, i32 -> vector<8x256xf32>
    %102 = vector.extract_strided_slice %2 {offsets = [3, 0, 0], sizes = [1, 1, 256], strides = [1, 1, 1]} : vector<9x1x256xf32> to vector<1x1x256xf32>
    %103 = vector.shape_cast %102 : vector<1x1x256xf32> to vector<1x256xf32>
    %104 = vector.broadcast %103 : vector<1x256xf32> to vector<8x256xf32>
    %105 = arith.mulf %101, %104 : vector<8x256xf32>
    %c255_i32_27 = arith.constant 255 : i32
    %106 = tpu.dynamic_rotate %85 by %c255_i32_27 dim 1 : vector<8x256xf32>, i32 -> vector<8x256xf32>
    %107 = vector.extract_strided_slice %2 {offsets = [5, 0, 0], sizes = [1, 1, 256], strides = [1, 1, 1]} : vector<9x1x256xf32> to vector<1x1x256xf32>
    %108 = vector.shape_cast %107 : vector<1x1x256xf32> to vector<1x256xf32>
    %109 = vector.broadcast %108 : vector<1x256xf32> to vector<8x256xf32>
    %110 = arith.mulf %106, %109 : vector<8x256xf32>
    %c241_i32_28 = arith.constant 241 : i32
    %111 = tpu.dynamic_rotate %85 by %c241_i32_28 dim 1 : vector<8x256xf32>, i32 -> vector<8x256xf32>
    %112 = vector.extract_strided_slice %2 {offsets = [6, 0, 0], sizes = [1, 1, 256], strides = [1, 1, 1]} : vector<9x1x256xf32> to vector<1x1x256xf32>
    %113 = vector.shape_cast %112 : vector<1x1x256xf32> to vector<1x256xf32>
    %114 = vector.broadcast %113 : vector<1x256xf32> to vector<8x256xf32>
    %115 = arith.mulf %111, %114 : vector<8x256xf32>
    %c240_i32_29 = arith.constant 240 : i32
    %116 = tpu.dynamic_rotate %85 by %c240_i32_29 dim 1 : vector<8x256xf32>, i32 -> vector<8x256xf32>
    %117 = vector.extract_strided_slice %2 {offsets = [7, 0, 0], sizes = [1, 1, 256], strides = [1, 1, 1]} : vector<9x1x256xf32> to vector<1x1x256xf32>
    %118 = vector.shape_cast %117 : vector<1x1x256xf32> to vector<1x256xf32>
    %119 = vector.broadcast %118 : vector<1x256xf32> to vector<8x256xf32>
    %120 = arith.mulf %116, %119 : vector<8x256xf32>
    %c239_i32_30 = arith.constant 239 : i32
    %121 = tpu.dynamic_rotate %85 by %c239_i32_30 dim 1 : vector<8x256xf32>, i32 -> vector<8x256xf32>
    %122 = vector.extract_strided_slice %2 {offsets = [8, 0, 0], sizes = [1, 1, 256], strides = [1, 1, 1]} : vector<9x1x256xf32> to vector<1x1x256xf32>
    %123 = vector.shape_cast %122 : vector<1x1x256xf32> to vector<1x256xf32>
    %124 = vector.broadcast %123 : vector<1x256xf32> to vector<8x256xf32>
    %125 = arith.mulf %121, %124 : vector<8x256xf32>
    %126 = tpu.concatenate %90, %95, %100, %105, %85, %110, %115, %120, %125 in 0 : vector<8x256xf32>, vector<8x256xf32>, vector<8x256xf32>, vector<8x256xf32>, vector<8x256xf32>, vector<8x256xf32>, vector<8x256xf32>, vector<8x256xf32>, vector<8x256xf32> -> vector<72x256xf32>
    %127 = arith.truncf %126 : vector<72x256xf32> to vector<72x256xbf16>
    %cst_31 = arith.constant dense<0.000000e+00> : vector<8x256xf32>
    %128 = tpu.matmul %4, %127, %cst_31 {dimension_numbers = #tpu.dot_dimension_numbers<[1], [0], [0], [1], [0, 0, 1, 1], [], []>} : vector<8x72xbf16>, vector<72x256xbf16>, vector<8x256xf32> -> vector<8x256xf32>
    %129 = arith.addf %128, %10 : vector<8x256xf32>
    %130 = arith.negf %129 : vector<8x256xf32>
    %131 = math.exp %130 : vector<8x256xf32>
    %cst_32 = arith.constant 1.000000e+00 : f32
    %132 = vector.broadcast %cst_32 : f32 to vector<8x256xf32>
    %133 = arith.addf %132, %131 : vector<8x256xf32>
    %134 = arith.divf %132, %133 : vector<8x256xf32>
    %135 = arith.mulf %129, %134 : vector<8x256xf32>
    %136 = arith.index_cast %c0_i32 : i32 to index
    %c0_33 = arith.constant 0 : index
    %c0_34 = arith.constant 0 : index
    %137 = vector.load %arg9[%136, %c0_33, %c0_34] : memref<2x8x256xf32, #tpu.memory_space<vmem>>, vector<1x8x256xf32>
    %138 = vector.shape_cast %137 : vector<1x8x256xf32> to vector<8x256xf32>
    %139 = vector.shape_cast %135 : vector<8x256xf32> to vector<1x8x256xf32>
    tpu.vector_store %arg9[%136, %c0_33, %c0_34], %139 {strides = array<i32>} : memref<2x8x256xf32, #tpu.memory_space<vmem>>, vector<1x8x256xf32>,
    %c1_i32_35 = arith.constant 1 : i32
    %140 = arith.index_cast %c1_i32_35 : i32 to index
    %c0_36 = arith.constant 0 : index
    %c0_37 = arith.constant 0 : index
    %141 = vector.load %arg1[%140, %c0_36, %c0_37] : memref<2x4x256xf32, #tpu.memory_space<vmem>>, vector<1x4x256xf32>
    %142 = vector.shape_cast %141 : vector<1x4x256xf32> to vector<4x256xf32>
    %143 = vector.shape_cast %142 : vector<4x256xf32> to vector<1x4x256xf32>
    %cst_38 = arith.constant dense<0.000000e+00> : vector<1xf32>
    %144 = vector.multi_reduction <add>, %143, %cst_38 [1, 2] : vector<1x4x256xf32> to vector<1xf32>
    %145 = vector.shape_cast %144 : vector<1xf32> to vector<1x1x1xf32>
    %146 = vector.extract %145[0, 0, 0] : f32 from vector<1x1x1xf32>
    %147 = arith.mulf %142, %142 : vector<4x256xf32>
    %148 = vector.shape_cast %147 : vector<4x256xf32> to vector<1x4x256xf32>
    %cst_39 = arith.constant dense<0.000000e+00> : vector<1xf32>
    %149 = vector.multi_reduction <add>, %148, %cst_39 [1, 2] : vector<1x4x256xf32> to vector<1xf32>
    %150 = vector.shape_cast %149 : vector<1xf32> to vector<1x1x1xf32>
    %151 = vector.extract %150[0, 0, 0] : f32 from vector<1x1x1xf32>
    %cst_40 = arith.constant 9.765625E-4 : f32
    %152 = arith.mulf %146, %cst_40 : f32
    %cst_41 = arith.constant 9.765625E-4 : f32
    %153 = arith.mulf %151, %cst_41 : f32
    %154 = arith.mulf %152, %152 : f32
    %155 = arith.subf %153, %154 : f32
    %cst_42 = arith.constant 0.000000e+00 : f32
    %156 = arith.maximumf %155, %cst_42 : f32
    %cst_43 = arith.constant 9.99999974E-6 : f32
    %157 = arith.addf %156, %cst_43 : f32
    %158 = math.rsqrt %157 : f32
    %159 = vector.broadcast %152 : f32 to vector<4x256xf32>
    %160 = arith.subf %142, %159 : vector<4x256xf32>
    %161 = vector.broadcast %158 : f32 to vector<4x256xf32>
    %162 = arith.mulf %160, %161 : vector<4x256xf32>
    %163 = arith.mulf %162, %0 : vector<4x256xf32>
    %164 = arith.addf %163, %1 : vector<4x256xf32>
    %c17_i32_44 = arith.constant 17 : i32
    %165 = tpu.dynamic_rotate %164 by %c17_i32_44 dim 1 : vector<4x256xf32>, i32 -> vector<4x256xf32>
    %166 = vector.extract_strided_slice %2 {offsets = [0, 0, 0], sizes = [1, 1, 256], strides = [1, 1, 1]} : vector<9x1x256xf32> to vector<1x1x256xf32>
    %167 = vector.shape_cast %166 : vector<1x1x256xf32> to vector<1x256xf32>
    %168 = vector.broadcast %167 : vector<1x256xf32> to vector<4x256xf32>
    %169 = arith.mulf %165, %168 : vector<4x256xf32>
    %c16_i32_45 = arith.constant 16 : i32
    %170 = tpu.dynamic_rotate %164 by %c16_i32_45 dim 1 : vector<4x256xf32>, i32 -> vector<4x256xf32>
    %171 = vector.extract_strided_slice %2 {offsets = [1, 0, 0], sizes = [1, 1, 256], strides = [1, 1, 1]} : vector<9x1x256xf32> to vector<1x1x256xf32>
    %172 = vector.shape_cast %171 : vector<1x1x256xf32> to vector<1x256xf32>
    %173 = vector.broadcast %172 : vector<1x256xf32> to vector<4x256xf32>
    %174 = arith.mulf %170, %173 : vector<4x256xf32>
    %c15_i32_46 = arith.constant 15 : i32
    %175 = tpu.dynamic_rotate %164 by %c15_i32_46 dim 1 : vector<4x256xf32>, i32 -> vector<4x256xf32>
    %176 = vector.extract_strided_slice %2 {offsets = [2, 0, 0], sizes = [1, 1, 256], strides = [1, 1, 1]} : vector<9x1x256xf32> to vector<1x1x256xf32>
    %177 = vector.shape_cast %176 : vector<1x1x256xf32> to vector<1x256xf32>
    %178 = vector.broadcast %177 : vector<1x256xf32> to vector<4x256xf32>
    %179 = arith.mulf %175, %178 : vector<4x256xf32>
    %c1_i32_47 = arith.constant 1 : i32
    %180 = tpu.dynamic_rotate %164 by %c1_i32_47 dim 1 : vector<4x256xf32>, i32 -> vector<4x256xf32>
    %181 = vector.extract_strided_slice %2 {offsets = [3, 0, 0], sizes = [1, 1, 256], strides = [1, 1, 1]} : vector<9x1x256xf32> to vector<1x1x256xf32>
    %182 = vector.shape_cast %181 : vector<1x1x256xf32> to vector<1x256xf32>
    %183 = vector.broadcast %182 : vector<1x256xf32> to vector<4x256xf32>
    %184 = arith.mulf %180, %183 : vector<4x256xf32>
    %c255_i32_48 = arith.constant 255 : i32
    %185 = tpu.dynamic_rotate %164 by %c255_i32_48 dim 1 : vector<4x256xf32>, i32 -> vector<4x256xf32>
    %186 = vector.extract_strided_slice %2 {offsets = [5, 0, 0], sizes = [1, 1, 256], strides = [1, 1, 1]} : vector<9x1x256xf32> to vector<1x1x256xf32>
    %187 = vector.shape_cast %186 : vector<1x1x256xf32> to vector<1x256xf32>
    %188 = vector.broadcast %187 : vector<1x256xf32> to vector<4x256xf32>
    %189 = arith.mulf %185, %188 : vector<4x256xf32>
    %c241_i32_49 = arith.constant 241 : i32
    %190 = tpu.dynamic_rotate %164 by %c241_i32_49 dim 1 : vector<4x256xf32>, i32 -> vector<4x256xf32>
    %191 = vector.extract_strided_slice %2 {offsets = [6, 0, 0], sizes = [1, 1, 256], strides = [1, 1, 1]} : vector<9x1x256xf32> to vector<1x1x256xf32>
    %192 = vector.shape_cast %191 : vector<1x1x256xf32> to vector<1x256xf32>
    %193 = vector.broadcast %192 : vector<1x256xf32> to vector<4x256xf32>
    %194 = arith.mulf %190, %193 : vector<4x256xf32>
    %c240_i32_50 = arith.constant 240 : i32
    %195 = tpu.dynamic_rotate %164 by %c240_i32_50 dim 1 : vector<4x256xf32>, i32 -> vector<4x256xf32>
    %196 = vector.extract_strided_slice %2 {offsets = [7, 0, 0], sizes = [1, 1, 256], strides = [1, 1, 1]} : vector<9x1x256xf32> to vector<1x1x256xf32>
    %197 = vector.shape_cast %196 : vector<1x1x256xf32> to vector<1x256xf32>
    %198 = vector.broadcast %197 : vector<1x256xf32> to vector<4x256xf32>
    %199 = arith.mulf %195, %198 : vector<4x256xf32>
    %c239_i32_51 = arith.constant 239 : i32
    %200 = tpu.dynamic_rotate %164 by %c239_i32_51 dim 1 : vector<4x256xf32>, i32 -> vector<4x256xf32>
    %201 = vector.extract_strided_slice %2 {offsets = [8, 0, 0], sizes = [1, 1, 256], strides = [1, 1, 1]} : vector<9x1x256xf32> to vector<1x1x256xf32>
    %202 = vector.shape_cast %201 : vector<1x1x256xf32> to vector<1x256xf32>
    %203 = vector.broadcast %202 : vector<1x256xf32> to vector<4x256xf32>
    %204 = arith.mulf %200, %203 : vector<4x256xf32>
    %205 = tpu.concatenate %169, %174, %179, %184, %164, %189, %194, %199, %204 in 0 : vector<4x256xf32>, vector<4x256xf32>, vector<4x256xf32>, vector<4x256xf32>, vector<4x256xf32>, vector<4x256xf32>, vector<4x256xf32>, vector<4x256xf32>, vector<4x256xf32> -> vector<36x256xf32>
    %206 = arith.truncf %205 : vector<36x256xf32> to vector<36x256xbf16>
    %cst_52 = arith.constant dense<0.000000e+00> : vector<8x256xf32>
    %207 = tpu.matmul %3, %206, %cst_52 {dimension_numbers = #tpu.dot_dimension_numbers<[1], [0], [0], [1], [0, 0, 1, 1], [], []>} : vector<8x36xbf16>, vector<36x256xbf16>, vector<8x256xf32> -> vector<8x256xf32>
    %208 = arith.addf %207, %7 : vector<8x256xf32>
    %209 = arith.negf %208 : vector<8x256xf32>
    %210 = math.exp %209 : vector<8x256xf32>
    %cst_53 = arith.constant 1.000000e+00 : f32
    %211 = vector.broadcast %cst_53 : f32 to vector<8x256xf32>
    %212 = arith.addf %211, %210 : vector<8x256xf32>
    %213 = arith.divf %211, %212 : vector<8x256xf32>
    %214 = arith.mulf %208, %213 : vector<8x256xf32>
    %c17_i32_54 = arith.constant 17 : i32
    %215 = tpu.dynamic_rotate %214 by %c17_i32_54 dim 1 : vector<8x256xf32>, i32 -> vector<8x256xf32>
    %216 = vector.extract_strided_slice %2 {offsets = [0, 0, 0], sizes = [1, 1, 256], strides = [1, 1, 1]} : vector<9x1x256xf32> to vector<1x1x256xf32>
    %217 = vector.shape_cast %216 : vector<1x1x256xf32> to vector<1x256xf32>
    %218 = vector.broadcast %217 : vector<1x256xf32> to vector<8x256xf32>
    %219 = arith.mulf %215, %218 : vector<8x256xf32>
    %c16_i32_55 = arith.constant 16 : i32
    %220 = tpu.dynamic_rotate %214 by %c16_i32_55 dim 1 : vector<8x256xf32>, i32 -> vector<8x256xf32>
    %221 = vector.extract_strided_slice %2 {offsets = [1, 0, 0], sizes = [1, 1, 256], strides = [1, 1, 1]} : vector<9x1x256xf32> to vector<1x1x256xf32>
    %222 = vector.shape_cast %221 : vector<1x1x256xf32> to vector<1x256xf32>
    %223 = vector.broadcast %222 : vector<1x256xf32> to vector<8x256xf32>
    %224 = arith.mulf %220, %223 : vector<8x256xf32>
    %c15_i32_56 = arith.constant 15 : i32
    %225 = tpu.dynamic_rotate %214 by %c15_i32_56 dim 1 : vector<8x256xf32>, i32 -> vector<8x256xf32>
    %226 = vector.extract_strided_slice %2 {offsets = [2, 0, 0], sizes = [1, 1, 256], strides = [1, 1, 1]} : vector<9x1x256xf32> to vector<1x1x256xf32>
    %227 = vector.shape_cast %226 : vector<1x1x256xf32> to vector<1x256xf32>
    %228 = vector.broadcast %227 : vector<1x256xf32> to vector<8x256xf32>
    %229 = arith.mulf %225, %228 : vector<8x256xf32>
    %c1_i32_57 = arith.constant 1 : i32
    %230 = tpu.dynamic_rotate %214 by %c1_i32_57 dim 1 : vector<8x256xf32>, i32 -> vector<8x256xf32>
    %231 = vector.extract_strided_slice %2 {offsets = [3, 0, 0], sizes = [1, 1, 256], strides = [1, 1, 1]} : vector<9x1x256xf32> to vector<1x1x256xf32>
    %232 = vector.shape_cast %231 : vector<1x1x256xf32> to vector<1x256xf32>
    %233 = vector.broadcast %232 : vector<1x256xf32> to vector<8x256xf32>
    %234 = arith.mulf %230, %233 : vector<8x256xf32>
    %c255_i32_58 = arith.constant 255 : i32
    %235 = tpu.dynamic_rotate %214 by %c255_i32_58 dim 1 : vector<8x256xf32>, i32 -> vector<8x256xf32>
    %236 = vector.extract_strided_slice %2 {offsets = [5, 0, 0], sizes = [1, 1, 256], strides = [1, 1, 1]} : vector<9x1x256xf32> to vector<1x1x256xf32>
    %237 = vector.shape_cast %236 : vector<1x1x256xf32> to vector<1x256xf32>
    %238 = vector.broadcast %237 : vector<1x256xf32> to vector<8x256xf32>
    %239 = arith.mulf %235, %238 : vector<8x256xf32>
    %c241_i32_59 = arith.constant 241 : i32
    %240 = tpu.dynamic_rotate %214 by %c241_i32_59 dim 1 : vector<8x256xf32>, i32 -> vector<8x256xf32>
    %241 = vector.extract_strided_slice %2 {offsets = [6, 0, 0], sizes = [1, 1, 256], strides = [1, 1, 1]} : vector<9x1x256xf32> to vector<1x1x256xf32>
    %242 = vector.shape_cast %241 : vector<1x1x256xf32> to vector<1x256xf32>
    %243 = vector.broadcast %242 : vector<1x256xf32> to vector<8x256xf32>
    %244 = arith.mulf %240, %243 : vector<8x256xf32>
    %c240_i32_60 = arith.constant 240 : i32
    %245 = tpu.dynamic_rotate %214 by %c240_i32_60 dim 1 : vector<8x256xf32>, i32 -> vector<8x256xf32>
    %246 = vector.extract_strided_slice %2 {offsets = [7, 0, 0], sizes = [1, 1, 256], strides = [1, 1, 1]} : vector<9x1x256xf32> to vector<1x1x256xf32>
    %247 = vector.shape_cast %246 : vector<1x1x256xf32> to vector<1x256xf32>
    %248 = vector.broadcast %247 : vector<1x256xf32> to vector<8x256xf32>
    %249 = arith.mulf %245, %248 : vector<8x256xf32>
    %c239_i32_61 = arith.constant 239 : i32
    %250 = tpu.dynamic_rotate %214 by %c239_i32_61 dim 1 : vector<8x256xf32>, i32 -> vector<8x256xf32>
    %251 = vector.extract_strided_slice %2 {offsets = [8, 0, 0], sizes = [1, 1, 256], strides = [1, 1, 1]} : vector<9x1x256xf32> to vector<1x1x256xf32>
    %252 = vector.shape_cast %251 : vector<1x1x256xf32> to vector<1x256xf32>
    %253 = vector.broadcast %252 : vector<1x256xf32> to vector<8x256xf32>
    %254 = arith.mulf %250, %253 : vector<8x256xf32>
    %255 = tpu.concatenate %219, %224, %229, %234, %214, %239, %244, %249, %254 in 0 : vector<8x256xf32>, vector<8x256xf32>, vector<8x256xf32>, vector<8x256xf32>, vector<8x256xf32>, vector<8x256xf32>, vector<8x256xf32>, vector<8x256xf32>, vector<8x256xf32> -> vector<72x256xf32>
    %256 = arith.truncf %255 : vector<72x256xf32> to vector<72x256xbf16>
    %cst_62 = arith.constant dense<0.000000e+00> : vector<8x256xf32>
    %257 = tpu.matmul %4, %256, %cst_62 {dimension_numbers = #tpu.dot_dimension_numbers<[1], [0], [0], [1], [0, 0, 1, 1], [], []>} : vector<8x72xbf16>, vector<72x256xbf16>, vector<8x256xf32> -> vector<8x256xf32>
    %258 = arith.addf %257, %10 : vector<8x256xf32>
    %259 = arith.negf %258 : vector<8x256xf32>
    %260 = math.exp %259 : vector<8x256xf32>
    %cst_63 = arith.constant 1.000000e+00 : f32
    %261 = vector.broadcast %cst_63 : f32 to vector<8x256xf32>
    %262 = arith.addf %261, %260 : vector<8x256xf32>
    %263 = arith.divf %261, %262 : vector<8x256xf32>
    %264 = arith.mulf %258, %263 : vector<8x256xf32>
    %265 = arith.index_cast %c1_i32_35 : i32 to index
    %c0_64 = arith.constant 0 : index
    %c0_65 = arith.constant 0 : index
    %266 = vector.load %arg9[%265, %c0_64, %c0_65] : memref<2x8x256xf32, #tpu.memory_space<vmem>>, vector<1x8x256xf32>
    %267 = vector.shape_cast %266 : vector<1x8x256xf32> to vector<8x256xf32>
    %268 = vector.shape_cast %264 : vector<8x256xf32> to vector<1x8x256xf32>
    tpu.vector_store %arg9[%265, %c0_64, %c0_65], %268 {strides = array<i32>} : memref<2x8x256xf32, #tpu.memory_space<vmem>>, vector<1x8x256xf32>,
    %c2_i32 = arith.constant 2 : i32
    return
  }
  func.func @transform_0(%arg0: i32) -> (i32, i32, i32) {
    %c0_i32 = arith.constant 0 : i32
    %c0_i32_0 = arith.constant 0 : i32
    %c0_i32_1 = arith.constant 0 : i32
    return %arg0, %c0_i32, %c0_i32_0 : i32, i32, i32
  }
  func.func @transform_1(%arg0: i32) -> (i32, i32) {
    %c0_i32 = arith.constant 0 : i32
    %c0_i32_0 = arith.constant 0 : i32
    %c0_i32_1 = arith.constant 0 : i32
    return %c0_i32, %c0_i32_0 : i32, i32
  }
  func.func @transform_2(%arg0: i32) -> (i32, i32) {
    %c0_i32 = arith.constant 0 : i32
    %c0_i32_0 = arith.constant 0 : i32
    %c0_i32_1 = arith.constant 0 : i32
    return %c0_i32, %c0_i32_0 : i32, i32
  }
  func.func @transform_3(%arg0: i32) -> (i32, i32, i32) {
    %c0_i32 = arith.constant 0 : i32
    %c0_i32_0 = arith.constant 0 : i32
    %c0_i32_1 = arith.constant 0 : i32
    %c0_i32_2 = arith.constant 0 : i32
    return %c0_i32, %c0_i32_0, %c0_i32_1 : i32, i32, i32
  }
  func.func @transform_4(%arg0: i32) -> (i32, i32) {
    %c0_i32 = arith.constant 0 : i32
    %c0_i32_0 = arith.constant 0 : i32
    %c0_i32_1 = arith.constant 0 : i32
    return %c0_i32, %c0_i32_0 : i32, i32
  }
  func.func @transform_5(%arg0: i32) -> (i32, i32) {
    %c0_i32 = arith.constant 0 : i32
    %c0_i32_0 = arith.constant 0 : i32
    %c0_i32_1 = arith.constant 0 : i32
    return %c0_i32, %c0_i32_0 : i32, i32
  }
  func.func @transform_6(%arg0: i32) -> (i32, i32) {
    %c0_i32 = arith.constant 0 : i32
    %c0_i32_0 = arith.constant 0 : i32
    %c0_i32_1 = arith.constant 0 : i32
    return %c0_i32, %c0_i32_0 : i32, i32
  }
  func.func @transform_7(%arg0: i32) -> (i32, i32) {
    %c0_i32 = arith.constant 0 : i32
    %c0_i32_0 = arith.constant 0 : i32
    %c0_i32_1 = arith.constant 0 : i32
    return %c0_i32, %c0_i32_0 : i32, i32
  }
  func.func @transform_8(%arg0: i32) -> (i32, i32, i32) {
    %c0_i32 = arith.constant 0 : i32
    %c0_i32_0 = arith.constant 0 : i32
    %c0_i32_1 = arith.constant 0 : i32
    return %arg0, %c0_i32, %c0_i32_0 : i32, i32, i32
  }
}

</mosaic_0001>

<llo_original>
// kernel: tpu_custom_call.1
$region0: #{tpu_custom_call.1}
  #allocation0 [shape = 'u32[]', space=smem, size = 0x4, offset = 0x4, fixed_abs, tag = 'smem constant byte address 0x4 - core index']
  #allocation1 [shape = 'u32[144,128]{1,0:T(1,128)}', space=vmem, size = 0x12000, scoped, tag = 'internal scratch']
  %s0 = inlined_call_operand.hbm [shape: f32[2,4,256], index: 0, kind: input, shape index: {}]
  %s1 = inlined_call_operand.vmem [shape: f32[4,256], index: 1, kind: input, shape index: {}]
  %s2 = inlined_call_operand.hbm [shape: f32[4,256], index: 2, kind: input, shape index: {}]
  %s3 = inlined_call_operand.vmem [shape: f32[9,1,256], index: 3, kind: input, shape index: {}]
  %s4 = inlined_call_operand.vmem [shape: bf16[8,36], index: 4, kind: input, shape index: {}]
  %s5 = inlined_call_operand.vmem [shape: f32[8,1], index: 5, kind: input, shape index: {}]
  %s6 = inlined_call_operand.vmem [shape: bf16[8,72], index: 6, kind: input, shape index: {}]
  %s7 = inlined_call_operand.vmem [shape: f32[8,1], index: 7, kind: input, shape index: {}]
  %s8 = inlined_call_operand.hbm [shape: f32[2,8,256], index: 8, kind: output, shape index: {}]
  %s9 = sld [smem:[#allocation0]]
  $region50: #{tpu_custom_call.1} parent=0
    _
  %s11 = ssub.s32 1, %s9
  %s12 = scalar_select 0, %s11, %s9
  $region1: #{tpu_custom_call.1} parent=0
    #allocation2 [shape = 'u8[8192]{0}', space=vmem, size = 0x2000, scoped, tag = 'input window, operand 0, single buffered']
    #allocation3 [shape = 's32[1]{0}', space=sflag, size = 0x4, scoped, tag = 'scoped memory for tpu_custom_call.1']
    #allocation4 [shape = 's32[1]{0}', space=sflag, size = 0x4, scoped, tag = 'scoped memory for tpu_custom_call.1']
    #allocation5 [shape = 'u8[4096]{0}', space=vmem, size = 0x1000, scoped, tag = 'input window, operand 2, single buffered']
    #allocation6 [shape = 's32[1]{0}', space=sflag, size = 0x4, scoped, tag = 'scoped memory for tpu_custom_call.1']
    #allocation7 [shape = 'u8[16384]{0}', space=vmem, size = 0x4000, scoped, tag = 'output window, operand 0, single buffered']
    %13 = vsyncpa [#allocation3], 0
    %14 = vsyncpa [#allocation6], 0
    %15 = vsyncpa [#allocation4], 0
    // Predicated region
    $region2: #{tpu_custom_call.1} parent=1 // pred_check
      _
    $region3: #{tpu_custom_call.1} parent=1 // pred_check_branch
      %17 = sbr.rel (0) target = $region5
    $region4: #{tpu_custom_call.1} parent=1 // pred_region
      %s19 = ssub.s32 256, 256
      %20 = vsyncadd [#allocation3], %s19
      %s21 = sshll.u32 [#allocation2], 4
      %s22 = int_to_ptr.vmem [resolvable:$true] %s21
      %27 = dma.hbm_to_vmem [thread:$0]  %s0, 256, %s22, [#allocation3], 128, 128, 8
    $region5: #{tpu_custom_call.1} parent=1 // pred_fallthru
      _
    // Predicated region
    $region6: #{tpu_custom_call.1} parent=1 // pred_check
      _
    $region7: #{tpu_custom_call.1} parent=1 // pred_check_branch
      %29 = sbr.rel (0) target = $region9
    $region8: #{tpu_custom_call.1} parent=1 // pred_region
      _
    $region9: #{tpu_custom_call.1} parent=1 // pred_fallthru
      _
    // Predicated region
    $region10: #{tpu_custom_call.1} parent=1 // pred_check
      _
    $region11: #{tpu_custom_call.1} parent=1 // pred_check_branch
      %31 = sbr.rel (0) target = $region13
    $region12: #{tpu_custom_call.1} parent=1 // pred_region
      %s33 = ssub.s32 128, 128
      %34 = vsyncadd [#allocation6], %s33
      %s36 = sshll.u32 [#allocation5], 4
      %s37 = int_to_ptr.vmem [resolvable:$true] %s36
      %39 = dma.hbm_to_vmem [thread:$0]  %s2, 128, %s37, [#allocation6]
    $region13: #{tpu_custom_call.1} parent=1 // pred_fallthru
      _
    // Predicated region
    $region14: #{tpu_custom_call.1} parent=1 // pred_check
      _
    $region15: #{tpu_custom_call.1} parent=1 // pred_check_branch
      %41 = sbr.rel (0) target = $region17
    $region16: #{tpu_custom_call.1} parent=1 // pred_region
      _
    $region17: #{tpu_custom_call.1} parent=1 // pred_fallthru
      _
    // Predicated region
    $region18: #{tpu_custom_call.1} parent=1 // pred_check
      _
    $region19: #{tpu_custom_call.1} parent=1 // pred_check_branch
      %43 = sbr.rel (0) target = $region21
    $region20: #{tpu_custom_call.1} parent=1 // pred_region
      _
    $region21: #{tpu_custom_call.1} parent=1 // pred_fallthru
      _
    // Predicated region
    $region22: #{tpu_custom_call.1} parent=1 // pred_check
      _
    $region23: #{tpu_custom_call.1} parent=1 // pred_check_branch
      %45 = sbr.rel (0) target = $region25
    $region24: #{tpu_custom_call.1} parent=1 // pred_region
      _
    $region25: #{tpu_custom_call.1} parent=1 // pred_fallthru
      _
    // Predicated region
    $region26: #{tpu_custom_call.1} parent=1 // pred_check
      _
    $region27: #{tpu_custom_call.1} parent=1 // pred_check_branch
      %47 = sbr.rel (0) target = $region29
    $region28: #{tpu_custom_call.1} parent=1 // pred_region
      _
    $region29: #{tpu_custom_call.1} parent=1 // pred_fallthru
      _
    // Predicated region
    $region30: #{tpu_custom_call.1} parent=1 // pred_check
      _
    $region31: #{tpu_custom_call.1} parent=1 // pred_check_branch
      %49 = sbr.rel (0) target = $region33
    $region32: #{tpu_custom_call.1} parent=1 // pred_region
      _
    $region33: #{tpu_custom_call.1} parent=1 // pred_fallthru
      _
    // Predicated region
    $region34: #{tpu_custom_call.1} parent=1 // pred_check
      _
    $region35: #{tpu_custom_call.1} parent=1 // pred_check_branch
      %51 = sbr.rel (0) target = $region37
    $region36: #{tpu_custom_call.1} parent=1 // pred_region
      %52 = dma.done [#allocation3], 256
    $region37: #{tpu_custom_call.1} parent=1 // pred_fallthru
      _
    // Predicated region
    $region38: #{tpu_custom_call.1} parent=1 // pred_check
      _
    $region39: #{tpu_custom_call.1} parent=1 // pred_check_branch
      %54 = sbr.rel (0) target = $region41
    $region40: #{tpu_custom_call.1} parent=1 // pred_region
      %55 = dma.done [#allocation6], 128
    $region41: #{tpu_custom_call.1} parent=1 // pred_fallthru
      _
    %v57 = vld [vmem:[%s1] sm:$0xff]
    %v58 = vld [vmem:[#allocation5] sm:$0xff]
    %v59 = vld [vmem:[%s3] sm:$0x3]
    %v60 = vld [vmem:[%s3 + $0x2] sm:$0x3]
    %v61 = vld [vmem:[%s3 + $0x4] sm:$0x3]
    %v62 = vld [vmem:[%s3 + $0x6] sm:$0x3]
    %v63 = vld [vmem:[%s3 + $0xa] sm:$0x3]
    %v64 = vld [vmem:[%s3 + $0xc] sm:$0x3]
    %v65 = vld [vmem:[%s3 + $0xe] sm:$0x3]
    %v66 = vld [vmem:[%s3 + $0x10] sm:$0x3]
    %v67 = vld [vmem:[%s4] sm:$0xf]
    %v68 = vld [vmem:[%s6] sm:$0xf]
    %v69 = vld [vmem:[%s5] sm:$0xff]
    %71 = vset.pattern.permute.xlu0 0
    %72 = vperm.xlu0 %71, %v69
    %v73 = vpop.permute.xlu0 %72
    %v75 = vld [vmem:[%s7] sm:$0xff]
    %77 = vset.pattern.permute.xlu0 0
    %78 = vperm.xlu0 %77, %v75
    %v79 = vpop.permute.xlu0 %78
    %v81 = vld [vmem:[#allocation2] sm:$0xff]
    %v83 = vcombine.high %v81, %v81
    %vm85 = vcmask 1043456
    %v86 = vsel %vm85, %v81, 0.0
    %v87 = vsel %vm85, %v83, 0.0
    %v88 = vadd.f32 %v86, %v87
    %89 = vadd.xlane.f32.xlu0 %v88
    %v90 = vpop.xlane.xlu0 %89
    %v91 = vrot.slane %v90, 4
    %v92 = vadd.f32 %v90, %v91
    %v93 = vrot.slane %v92, 2
    %v94 = vadd.f32 %v92, %v93
    %v95 = vrot.slane %v94, 1
    %v96 = vadd.f32 %v94, %v95
    %s97 = vtos %v96
    %v98 = vmul.f32 %v81, %v81
    %v100 = vcombine.high %v98, %v98
    %v102 = vsel %vm85, %v98, 0.0
    %v103 = vsel %vm85, %v100, 0.0
    %v104 = vadd.f32 %v102, %v103
    %105 = vadd.xlane.f32.xlu0 %v104
    %v106 = vpop.xlane.xlu0 %105
    %v107 = vrot.slane %v106, 4
    %v108 = vadd.f32 %v106, %v107
    %v109 = vrot.slane %v108, 2
    %v110 = vadd.f32 %v108, %v109
    %v111 = vrot.slane %v110, 1
    %v112 = vadd.f32 %v110, %v111
    %s113 = vtos %v112
    %s114 = smul.f32 %s97, 0.0009765625
    %s115 = smul.f32 %s113, 0.0009765625
    %s116 = smul.f32 %s114, %s114
    %s117 = ssub.f32 %s115, %s116
    %s118 = smax.f32 %s117, 0.0
    %s119 = sadd.f32 %s118, 1e-05
    %v120 = vstv %s119
    %v121 = vrsqrt.pop %v120
    %s122 = vtos %v121
    %v123 = vstv %s114
    %v124 = vsub.f32 %v81, %v123
    %v125 = vstv %s122
    %v126 = vmul.f32 %v124, %v125
    %v127 = vmul.f32 %v126, %v57
    %v128 = vadd.f32 %v127, %v58
    %v130 = vcombine.high %v128, %v128
    %132 = vrot.lane.b32.xlu0 %v128, 17
    %v133 = vpop.permute.xlu0 %132
    %134 = vrot.lane.b32.xlu0 %v130, 17
    %v135 = vpop.permute.xlu0 %134
    %v136 = vlaneseq
    %v137 = vand.u32 %v136, 127
    %vm138 = vcmp.lt.s32.totalorder %v137, 17
    %v139 = vsel %vm138, %v133, %v135
    %v140 = vsel %vm138, %v135, %v133
    %v142 = vlaneseq
    %v143 = vshrl.u32 %v142, 7
    %v144 = vsub.s32 0, %v143
    %v145 = vrot.slane %v59, %v144
    %v146 = vlaneseq
    %v147 = vshrl.u32 %v146, 7
    %v148 = vsub.s32 1, %v147
    %v149 = vrot.slane %v59, %v148
    %v152 = vmul.f32 %v140, %v145
    %v153 = vmul.f32 %v139, %v149
    %154 = vrot.lane.b32.xlu0 %v128, 16
    %v155 = vpop.permute.xlu0 %154
    %156 = vrot.lane.b32.xlu0 %v130, 16
    %v157 = vpop.permute.xlu0 %156
    %vm158 = vcmp.lt.s32.totalorder %v137, 16
    %v159 = vsel %vm158, %v155, %v157
    %v160 = vsel %vm158, %v157, %v155
    %v162 = vlaneseq
    %v163 = vshrl.u32 %v162, 7
    %v164 = vsub.s32 0, %v163
    %v165 = vrot.slane %v60, %v164
    %v166 = vlaneseq
    %v167 = vshrl.u32 %v166, 7
    %v168 = vsub.s32 1, %v167
    %v169 = vrot.slane %v60, %v168
    %v172 = vmul.f32 %v160, %v165
    %v173 = vmul.f32 %v159, %v169
    %174 = vrot.lane.b32.xlu0 %v128, 15
    %v175 = vpop.permute.xlu0 %174
    %176 = vrot.lane.b32.xlu0 %v130, 15
    %v177 = vpop.permute.xlu0 %176
    %vm178 = vcmp.lt.s32.totalorder %v137, 15
    %v179 = vsel %vm178, %v175, %v177
    %v180 = vsel %vm178, %v177, %v175
    %v182 = vlaneseq
    %v183 = vshrl.u32 %v182, 7
    %v184 = vsub.s32 0, %v183
    %v185 = vrot.slane %v61, %v184
    %v186 = vlaneseq
    %v187 = vshrl.u32 %v186, 7
    %v188 = vsub.s32 1, %v187
    %v189 = vrot.slane %v61, %v188
    %v192 = vmul.f32 %v180, %v185
    %v193 = vmul.f32 %v179, %v189
    %194 = vrot.lane.b32.xlu0 %v128, 1
    %v195 = vpop.permute.xlu0 %194
    %196 = vrot.lane.b32.xlu0 %v130, 1
    %v197 = vpop.permute.xlu0 %196
    %vm198 = vcmp.lt.s32.totalorder %v137, 1
    %v199 = vsel %vm198, %v195, %v197
    %v200 = vsel %vm198, %v197, %v195
    %v202 = vlaneseq
    %v203 = vshrl.u32 %v202, 7
    %v204 = vsub.s32 0, %v203
    %v205 = vrot.slane %v62, %v204
    %v206 = vlaneseq
    %v207 = vshrl.u32 %v206, 7
    %v208 = vsub.s32 1, %v207
    %v209 = vrot.slane %v62, %v208
    %v212 = vmul.f32 %v200, %v205
    %v213 = vmul.f32 %v199, %v209
    %214 = vrot.lane.b32.xlu0 %v128, 127
    %v215 = vpop.permute.xlu0 %214
    %216 = vrot.lane.b32.xlu0 %v130, 127
    %v217 = vpop.permute.xlu0 %216
    %vm218 = vcmp.lt.s32.totalorder %v137, 127
    %v219 = vsel %vm218, %v215, %v217
    %v220 = vsel %vm218, %v217, %v215
    %v222 = vlaneseq
    %v223 = vshrl.u32 %v222, 7
    %v224 = vsub.s32 0, %v223
    %v225 = vrot.slane %v63, %v224
    %v226 = vlaneseq
    %v227 = vshrl.u32 %v226, 7
    %v228 = vsub.s32 1, %v227
    %v229 = vrot.slane %v63, %v228
    %v232 = vmul.f32 %v219, %v225
    %v233 = vmul.f32 %v220, %v229
    %234 = vrot.lane.b32.xlu0 %v128, 113
    %v235 = vpop.permute.xlu0 %234
    %236 = vrot.lane.b32.xlu0 %v130, 113
    %v237 = vpop.permute.xlu0 %236
    %vm238 = vcmp.lt.s32.totalorder %v137, 113
    %v239 = vsel %vm238, %v235, %v237
    %v240 = vsel %vm238, %v237, %v235
    %v242 = vlaneseq
    %v243 = vshrl.u32 %v242, 7
    %v244 = vsub.s32 0, %v243
    %v245 = vrot.slane %v64, %v244
    %v246 = vlaneseq
    %v247 = vshrl.u32 %v246, 7
    %v248 = vsub.s32 1, %v247
    %v249 = vrot.slane %v64, %v248
    %v252 = vmul.f32 %v239, %v245
    %v253 = vmul.f32 %v240, %v249
    %254 = vrot.lane.b32.xlu0 %v128, 112
    %v255 = vpop.permute.xlu0 %254
    %256 = vrot.lane.b32.xlu0 %v130, 112
    %v257 = vpop.permute.xlu0 %256
    %vm258 = vcmp.lt.s32.totalorder %v137, 112
    %v259 = vsel %vm258, %v255, %v257
    %v260 = vsel %vm258, %v257, %v255
    %v262 = vlaneseq
    %v263 = vshrl.u32 %v262, 7
    %v264 = vsub.s32 0, %v263
    %v265 = vrot.slane %v65, %v264
    %v266 = vlaneseq
    %v267 = vshrl.u32 %v266, 7
    %v268 = vsub.s32 1, %v267
    %v269 = vrot.slane %v65, %v268
    %v272 = vmul.f32 %v259, %v265
    %v273 = vmul.f32 %v260, %v269
    %274 = vrot.lane.b32.xlu0 %v128, 111
    %v275 = vpop.permute.xlu0 %274
    %276 = vrot.lane.b32.xlu0 %v130, 111
    %v277 = vpop.permute.xlu0 %276
    %vm278 = vcmp.lt.s32.totalorder %v137, 111
    %v279 = vsel %vm278, %v275, %v277
    %v280 = vsel %vm278, %v277, %v275
    %v282 = vlaneseq
    %v283 = vshrl.u32 %v282, 7
    %v284 = vsub.s32 0, %v283
    %v285 = vrot.slane %v66, %v284
    %v286 = vlaneseq
    %v287 = vshrl.u32 %v286, 7
    %v288 = vsub.s32 1, %v287
    %v289 = vrot.slane %v66, %v288
    %v292 = vmul.f32 %v279, %v285
    %v293 = vmul.f32 %v280, %v289
    %v296 = vrot.slane %v172, 4
    %v297 = vrot.slane %v173, 4
    %v302 = vrot.slane %v212, 4
    %v303 = vrot.slane %v213, 4
    %v308 = vrot.slane %v232, 4
    %v309 = vrot.slane %v233, 4
    %v314 = vrot.slane %v272, 4
    %v315 = vrot.slane %v273, 4
    %v318 = vsel %vm85, %v152, %v296
    %v319 = vsel %vm85, %v153, %v297
    %v320 = vsel %vm85, %v192, %v302
    %v321 = vsel %vm85, %v193, %v303
    %v322 = vsel %vm85, %v128, %v308
    %v323 = vsel %vm85, %v130, %v309
    %v324 = vsel %vm85, %v252, %v314
    %v325 = vsel %vm85, %v253, %v315
    %v326 = vpack.c.bf16 %v320, %v318
    %v327 = vpack.c.bf16 %v321, %v319
    %v328 = vpack.c.bf16 %v324, %v322
    %v329 = vpack.c.bf16 %v325, %v323
    %v330 = vpack.c.bf16 %v292, %v292
    %v331 = vpack.c.bf16 %v293, %v293
    %vm332 = vcmask 293888
    %v334 = vsel %vm332, %v67, 0
    %vm336 = vcmask 1041408
    %v338 = vsel %vm336, %v330, 0
    %v341 = vsel %vm336, %v331, 0
    %343 = vmatprep.subr.bf16.mxu0 %v327
    %344 = vmatpush1.bf16.msra.mxu0 %v326
    %345 = vmatprep.subr.bf16.mxu0 %v329
    %346 = vmatpush1.bf16.msra.mxu0 %v328
    %347 = vmatprep.subr.bf16.mxu0 %v341
    %348 = vmatpush1.bf16.msra.mxu0 %v338
    %349 = vmatprep.subr.bf16.mxu0 0
    %350 = vmatpush1.bf16.msra.mxu0 0
    %351 = vmatprep.subr.bf16.mxu0 0
    %352 = vmatpush1.bf16.msra.mxu0 0
    %353 = vmatprep.subr.bf16.mxu0 0
    %354 = vmatpush1.bf16.msra.mxu0 0
    %355 = vmatprep.subr.bf16.mxu0 0
    %356 = vmatpush1.bf16.msra.mxu0 0
    %357 = vmatprep.subr.bf16.mxu0 0
    %358 = vmatpush1.bf16.msra.mxu0 0
    %359 = vmatprep.subr.bf16.mxu0 0
    %360 = vmatpush1.bf16.msra.mxu0 0
    %361 = vmatprep.subr.bf16.mxu0 0
    %362 = vmatpush1.bf16.msra.mxu0 0
    %363 = vmatprep.subr.bf16.mxu0 0
    %364 = vmatpush1.bf16.msra.mxu0 0
    %365 = vmatprep.subr.bf16.mxu0 0
    %366 = vmatpush1.bf16.msra.mxu0 0
    %367 = vmatprep.subr.bf16.mxu0 0
    %368 = vmatpush1.bf16.msra.mxu0 0
    %369 = vmatprep.subr.bf16.mxu0 0
    %370 = vmatpush1.bf16.msra.mxu0 0
    %371 = vmatprep.subr.bf16.mxu0 0
    %372 = vmatpush1.bf16.msra.mxu0 0
    %373 = vmatprep.subr.bf16.mxu0 0
    %374 = vmatpush1.bf16.msra.mxu0 0
    %375 = vmatprep.mubr.bf16.mxu0 0
    %376 = vmatmul.mubr.bf16.gmra.mrb[0].mxu0 %v334
    %v377 = vpop.f32.mrb[0].mxu0
    %v378 = vadd.f32 %v73, %v377
    %v379 = vpop.f32.mrb[0].mxu0
    %v380 = vadd.f32 %v73, %v379
    %v381 = vpop.f32.mrb[0].mxu0
    %v382 = vpop.f32.mrb[0].mxu0
    %383 = vdwg.mxu0
    %v384 = vxor.u32 %v378, 2147483648
    %v385 = vxor.u32 %v380, 2147483648
    %v386 = vmul.f32 %v384, 1.442695
    %v387 = vpow.pop %v386
    %v388 = vmul.f32 %v385, 1.442695
    %v389 = vpow.pop %v388
    %v390 = vadd.f32 %v387, 1.0
    %v391 = vadd.f32 %v389, 1.0
    %v392 = vrcp.pop %v390
    %v393 = vmul.f32 1.0, %v392
    %v394 = vrcp.pop %v391
    %v395 = vmul.f32 1.0, %v394
    %v396 = vmul.f32 %v378, %v393
    %v397 = vmul.f32 %v380, %v395
    %398 = vrot.lane.b32.xlu0 %v396, 17
    %v399 = vpop.permute.xlu0 %398
    %400 = vrot.lane.b32.xlu0 %v397, 17
    %v401 = vpop.permute.xlu0 %400
    %v402 = vsel %vm138, %v399, %v401
    %v403 = vsel %vm138, %v401, %v399
    %v404 = vmul.f32 %v403, %v145
    %v405 = vmul.f32 %v402, %v149
    %406 = vrot.lane.b32.xlu0 %v396, 16
    %v407 = vpop.permute.xlu0 %406
    %408 = vrot.lane.b32.xlu0 %v397, 16
    %v409 = vpop.permute.xlu0 %408
    %v410 = vsel %vm158, %v407, %v409
    %v411 = vsel %vm158, %v409, %v407
    %v412 = vmul.f32 %v411, %v165
    %v413 = vmul.f32 %v410, %v169
    %414 = vrot.lane.b32.xlu0 %v396, 15
    %v415 = vpop.permute.xlu0 %414
    %416 = vrot.lane.b32.xlu0 %v397, 15
    %v417 = vpop.permute.xlu0 %416
    %v418 = vsel %vm178, %v415, %v417
    %v419 = vsel %vm178, %v417, %v415
    %v420 = vmul.f32 %v419, %v185
    %v421 = vmul.f32 %v418, %v189
    %422 = vrot.lane.b32.xlu0 %v396, 1
    %v423 = vpop.permute.xlu0 %422
    %424 = vrot.lane.b32.xlu0 %v397, 1
    %v425 = vpop.permute.xlu0 %424
    %v426 = vsel %vm198, %v423, %v425
    %v427 = vsel %vm198, %v425, %v423
    %v428 = vmul.f32 %v427, %v205
    %v429 = vmul.f32 %v426, %v209
    %430 = vrot.lane.b32.xlu0 %v396, 127
    %v431 = vpop.permute.xlu0 %430
    %432 = vrot.lane.b32.xlu0 %v397, 127
    %v433 = vpop.permute.xlu0 %432
    %v434 = vsel %vm218, %v431, %v433
    %v435 = vsel %vm218, %v433, %v431
    %v436 = vmul.f32 %v434, %v225
    %v437 = vmul.f32 %v435, %v229
    %438 = vrot.lane.b32.xlu0 %v396, 113
    %v439 = vpop.permute.xlu0 %438
    %440 = vrot.lane.b32.xlu0 %v397, 113
    %v441 = vpop.permute.xlu0 %440
    %v442 = vsel %vm238, %v439, %v441
    %v443 = vsel %vm238, %v441, %v439
    %v444 = vmul.f32 %v442, %v245
    %v445 = vmul.f32 %v443, %v249
    %446 = vrot.lane.b32.xlu0 %v396, 112
    %v447 = vpop.permute.xlu0 %446
    %448 = vrot.lane.b32.xlu0 %v397, 112
    %v449 = vpop.permute.xlu0 %448
    %v450 = vsel %vm258, %v447, %v449
    %v451 = vsel %vm258, %v449, %v447
    %v452 = vmul.f32 %v450, %v265
    %v453 = vmul.f32 %v451, %v269
    %454 = vrot.lane.b32.xlu0 %v396, 111
    %v455 = vpop.permute.xlu0 %454
    %456 = vrot.lane.b32.xlu0 %v397, 111
    %v457 = vpop.permute.xlu0 %456
    %v458 = vsel %vm278, %v455, %v457
    %v459 = vsel %vm278, %v457, %v455
    %v460 = vmul.f32 %v458, %v285
    %v461 = vmul.f32 %v459, %v289
    %v462 = vpack.c.bf16 %v412, %v404
    %v463 = vpack.c.bf16 %v413, %v405
    %v464 = vpack.c.bf16 %v428, %v420
    %v465 = vpack.c.bf16 %v429, %v421
    %v466 = vpack.c.bf16 %v436, %v396
    %v467 = vpack.c.bf16 %v437, %v397
    %v468 = vpack.c.bf16 %v452, %v444
    %v469 = vpack.c.bf16 %v453, %v445
    %v470 = vpack.c.bf16 %v460, %v460
    %v471 = vpack.c.bf16 %v461, %v461
    %vm472 = vcmask 588800
    %v474 = vsel %vm472, %v68, 0
    %v477 = vsel %vm85, %v470, 0
    %v480 = vsel %vm85, %v471, 0
    %482 = vmatprep.subr.bf16.mxu0 %v463
    %483 = vmatpush1.bf16.msra.mxu0 %v462
    %484 = vmatprep.subr.bf16.mxu0 %v465
    %485 = vmatpush1.bf16.msra.mxu0 %v464
    %486 = vmatprep.subr.bf16.mxu0 %v467
    %487 = vmatpush1.bf16.msra.mxu0 %v466
    %488 = vmatprep.subr.bf16.mxu0 %v469
    %489 = vmatpush1.bf16.msra.mxu0 %v468
    %490 = vmatprep.subr.bf16.mxu0 %v480
    %491 = vmatpush1.bf16.msra.mxu0 %v477
    %492 = vmatprep.subr.bf16.mxu0 0
    %493 = vmatpush1.bf16.msra.mxu0 0
    %494 = vmatprep.subr.bf16.mxu0 0
    %495 = vmatpush1.bf16.msra.mxu0 0
    %496 = vmatprep.subr.bf16.mxu0 0
    %497 = vmatpush1.bf16.msra.mxu0 0
    %498 = vmatprep.subr.bf16.mxu0 0
    %499 = vmatpush1.bf16.msra.mxu0 0
    %500 = vmatprep.subr.bf16.mxu0 0
    %501 = vmatpush1.bf16.msra.mxu0 0
    %502 = vmatprep.subr.bf16.mxu0 0
    %503 = vmatpush1.bf16.msra.mxu0 0
    %504 = vmatprep.subr.bf16.mxu0 0
    %505 = vmatpush1.bf16.msra.mxu0 0
    %506 = vmatprep.subr.bf16.mxu0 0
    %507 = vmatpush1.bf16.msra.mxu0 0
    %508 = vmatprep.subr.bf16.mxu0 0
    %509 = vmatpush1.bf16.msra.mxu0 0
    %510 = vmatprep.subr.bf16.mxu0 0
    %511 = vmatpush1.bf16.msra.mxu0 0
    %512 = vmatprep.subr.bf16.mxu0 0
    %513 = vmatpush1.bf16.msra.mxu0 0
    %514 = vmatprep.mubr.bf16.mxu0 0
    %515 = vmatmul.mubr.bf16.gmra.mrb[0].mxu0 %v474
    %v516 = vpop.f32.mrb[0].mxu0
    %v517 = vadd.f32 %v79, %v516
    %v518 = vpop.f32.mrb[0].mxu0
    %v519 = vadd.f32 %v79, %v518
    %v520 = vpop.f32.mrb[0].mxu0
    %v521 = vpop.f32.mrb[0].mxu0
    %522 = vdwg.mxu0
    %v523 = vxor.u32 %v517, 2147483648
    %v524 = vxor.u32 %v519, 2147483648
    %v525 = vmul.f32 %v523, 1.442695
    %v526 = vpow.pop %v525
    %v527 = vmul.f32 %v524, 1.442695
    %v528 = vpow.pop %v527
    %v529 = vadd.f32 %v526, 1.0
    %v530 = vadd.f32 %v528, 1.0
    %v531 = vrcp.pop %v529
    %v532 = vmul.f32 1.0, %v531
    %v533 = vrcp.pop %v530
    %v534 = vmul.f32 1.0, %v533
    %v535 = vmul.f32 %v517, %v532
    %v536 = vmul.f32 %v519, %v534
    %537 = vst [vmem:[#allocation7] sm:$0xff] %v535
    %538 = vst [vmem:[#allocation7 + $0x8] sm:$0xff] %v536
    %s539 = scalar_lea.vmem [#allocation2], 8
    %v540 = vld [vmem:[%s539] sm:$0xff]
    %v542 = vcombine.high %v540, %v540
    %v544 = vsel %vm85, %v540, 0.0
    %v545 = vsel %vm85, %v542, 0.0
    %v546 = vadd.f32 %v544, %v545
    %547 = vadd.xlane.f32.xlu0 %v546
    %v548 = vpop.xlane.xlu0 %547
    %v549 = vrot.slane %v548, 4
    %v550 = vadd.f32 %v548, %v549
    %v551 = vrot.slane %v550, 2
    %v552 = vadd.f32 %v550, %v551
    %v553 = vrot.slane %v552, 1
    %v554 = vadd.f32 %v552, %v553
    %s555 = vtos %v554
    %v556 = vmul.f32 %v540, %v540
    %v558 = vcombine.high %v556, %v556
    %v560 = vsel %vm85, %v556, 0.0
    %v561 = vsel %vm85, %v558, 0.0
    %v562 = vadd.f32 %v560, %v561
    %563 = vadd.xlane.f32.xlu0 %v562
    %v564 = vpop.xlane.xlu0 %563
    %v565 = vrot.slane %v564, 4
    %v566 = vadd.f32 %v564, %v565
    %v567 = vrot.slane %v566, 2
    %v568 = vadd.f32 %v566, %v567
    %v569 = vrot.slane %v568, 1
    %v570 = vadd.f32 %v568, %v569
    %s571 = vtos %v570
    %s572 = smul.f32 %s555, 0.0009765625
    %s573 = smul.f32 %s571, 0.0009765625
    %s574 = smul.f32 %s572, %s572
    %s575 = ssub.f32 %s573, %s574
    %s576 = smax.f32 %s575, 0.0
    %s577 = sadd.f32 %s576, 1e-05
    %v578 = vstv %s577
    %v579 = vrsqrt.pop %v578
    %s580 = vtos %v579
    %v581 = vstv %s572
    %v582 = vsub.f32 %v540, %v581
    %v583 = vstv %s580
    %v584 = vmul.f32 %v582, %v583
    %v585 = vmul.f32 %v584, %v57
    %v586 = vadd.f32 %v585, %v58
    %v588 = vcombine.high %v586, %v586
    %590 = vrot.lane.b32.xlu0 %v586, 17
    %v591 = vpop.permute.xlu0 %590
    %592 = vrot.lane.b32.xlu0 %v588, 17
    %v593 = vpop.permute.xlu0 %592
    %v594 = vsel %vm138, %v591, %v593
    %v595 = vsel %vm138, %v593, %v591
    %v596 = vmul.f32 %v595, %v145
    %v597 = vmul.f32 %v594, %v149
    %598 = vrot.lane.b32.xlu0 %v586, 16
    %v599 = vpop.permute.xlu0 %598
    %600 = vrot.lane.b32.xlu0 %v588, 16
    %v601 = vpop.permute.xlu0 %600
    %v602 = vsel %vm158, %v599, %v601
    %v603 = vsel %vm158, %v601, %v599
    %v604 = vmul.f32 %v603, %v165
    %v605 = vmul.f32 %v602, %v169
    %606 = vrot.lane.b32.xlu0 %v586, 15
    %v607 = vpop.permute.xlu0 %606
    %608 = vrot.lane.b32.xlu0 %v588, 15
    %v609 = vpop.permute.xlu0 %608
    %v610 = vsel %vm178, %v607, %v609
    %v611 = vsel %vm178, %v609, %v607
    %v612 = vmul.f32 %v611, %v185
    %v613 = vmul.f32 %v610, %v189
    %614 = vrot.lane.b32.xlu0 %v586, 1
    %v615 = vpop.permute.xlu0 %614
    %616 = vrot.lane.b32.xlu0 %v588, 1
    %v617 = vpop.permute.xlu0 %616
    %v618 = vsel %vm198, %v615, %v617
    %v619 = vsel %vm198, %v617, %v615
    %v620 = vmul.f32 %v619, %v205
    %v621 = vmul.f32 %v618, %v209
    %622 = vrot.lane.b32.xlu0 %v586, 127
    %v623 = vpop.permute.xlu0 %622
    %624 = vrot.lane.b32.xlu0 %v588, 127
    %v625 = vpop.permute.xlu0 %624
    %v626 = vsel %vm218, %v623, %v625
    %v627 = vsel %vm218, %v625, %v623
    %v628 = vmul.f32 %v626, %v225
    %v629 = vmul.f32 %v627, %v229
    %630 = vrot.lane.b32.xlu0 %v586, 113
    %v631 = vpop.permute.xlu0 %630
    %632 = vrot.lane.b32.xlu0 %v588, 113
    %v633 = vpop.permute.xlu0 %632
    %v634 = vsel %vm238, %v631, %v633
    %v635 = vsel %vm238, %v633, %v631
    %v636 = vmul.f32 %v634, %v245
    %v637 = vmul.f32 %v635, %v249
    %638 = vrot.lane.b32.xlu0 %v586, 112
    %v639 = vpop.permute.xlu0 %638
    %640 = vrot.lane.b32.xlu0 %v588, 112
    %v641 = vpop.permute.xlu0 %640
    %v642 = vsel %vm258, %v639, %v641
    %v643 = vsel %vm258, %v641, %v639
    %v644 = vmul.f32 %v642, %v265
    %v645 = vmul.f32 %v643, %v269
    %646 = vrot.lane.b32.xlu0 %v586, 111
    %v647 = vpop.permute.xlu0 %646
    %648 = vrot.lane.b32.xlu0 %v588, 111
    %v649 = vpop.permute.xlu0 %648
    %v650 = vsel %vm278, %v647, %v649
    %v651 = vsel %vm278, %v649, %v647
    %v652 = vmul.f32 %v650, %v285
    %v653 = vmul.f32 %v651, %v289
    %v656 = vrot.slane %v604, 4
    %v657 = vrot.slane %v605, 4
    %v662 = vrot.slane %v620, 4
    %v663 = vrot.slane %v621, 4
    %v668 = vrot.slane %v628, 4
    %v669 = vrot.slane %v629, 4
    %v674 = vrot.slane %v644, 4
    %v675 = vrot.slane %v645, 4
    %v678 = vsel %vm85, %v596, %v656
    %v679 = vsel %vm85, %v597, %v657
    %v680 = vsel %vm85, %v612, %v662
    %v681 = vsel %vm85, %v613, %v663
    %v682 = vsel %vm85, %v586, %v668
    %v683 = vsel %vm85, %v588, %v669
    %v684 = vsel %vm85, %v636, %v674
    %v685 = vsel %vm85, %v637, %v675
    %v686 = vpack.c.bf16 %v680, %v678
    %v687 = vpack.c.bf16 %v681, %v679
    %v688 = vpack.c.bf16 %v684, %v682
    %v689 = vpack.c.bf16 %v685, %v683
    %v690 = vpack.c.bf16 %v652, %v652
    %v691 = vpack.c.bf16 %v653, %v653
    %v693 = vsel %vm336, %v690, 0
    %v696 = vsel %vm336, %v691, 0
    %698 = vmatprep.subr.bf16.mxu0 %v687
    %699 = vmatpush1.bf16.msra.mxu0 %v686
    %700 = vmatprep.subr.bf16.mxu0 %v689
    %701 = vmatpush1.bf16.msra.mxu0 %v688
    %702 = vmatprep.subr.bf16.mxu0 %v696
    %703 = vmatpush1.bf16.msra.mxu0 %v693
    %704 = vmatprep.subr.bf16.mxu0 0
    %705 = vmatpush1.bf16.msra.mxu0 0
    %706 = vmatprep.subr.bf16.mxu0 0
    %707 = vmatpush1.bf16.msra.mxu0 0
    %708 = vmatprep.subr.bf16.mxu0 0
    %709 = vmatpush1.bf16.msra.mxu0 0
    %710 = vmatprep.subr.bf16.mxu0 0
    %711 = vmatpush1.bf16.msra.mxu0 0
    %712 = vmatprep.subr.bf16.mxu0 0
    %713 = vmatpush1.bf16.msra.mxu0 0
    %714 = vmatprep.subr.bf16.mxu0 0
    %715 = vmatpush1.bf16.msra.mxu0 0
    %716 = vmatprep.subr.bf16.mxu0 0
    %717 = vmatpush1.bf16.msra.mxu0 0
    %718 = vmatprep.subr.bf16.mxu0 0
    %719 = vmatpush1.bf16.msra.mxu0 0
    %720 = vmatprep.subr.bf16.mxu0 0
    %721 = vmatpush1.bf16.msra.mxu0 0
    %722 = vmatprep.subr.bf16.mxu0 0
    %723 = vmatpush1.bf16.msra.mxu0 0
    %724 = vmatprep.subr.bf16.mxu0 0
    %725 = vmatpush1.bf16.msra.mxu0 0
    %726 = vmatprep.subr.bf16.mxu0 0
    %727 = vmatpush1.bf16.msra.mxu0 0
    %728 = vmatprep.subr.bf16.mxu0 0
    %729 = vmatpush1.bf16.msra.mxu0 0
    %730 = vmatprep.mubr.bf16.mxu0 0
    %731 = vmatmul.mubr.bf16.gmra.mrb[0].mxu0 %v334
    %v732 = vpop.f32.mrb[0].mxu0
    %v733 = vadd.f32 %v73, %v732
    %v734 = vpop.f32.mrb[0].mxu0
    %v735 = vadd.f32 %v73, %v734
    %v736 = vpop.f32.mrb[0].mxu0
    %v737 = vpop.f32.mrb[0].mxu0
    %738 = vdwg.mxu0
    %v739 = vxor.u32 %v733, 2147483648
    %v740 = vxor.u32 %v735, 2147483648
    %v741 = vmul.f32 %v739, 1.442695
    %v742 = vpow.pop %v741
    %v743 = vmul.f32 %v740, 1.442695
    %v744 = vpow.pop %v743
    %v745 = vadd.f32 %v742, 1.0
    %v746 = vadd.f32 %v744, 1.0
    %v747 = vrcp.pop %v745
    %v748 = vmul.f32 1.0, %v747
    %v749 = vrcp.pop %v746
    %v750 = vmul.f32 1.0, %v749
    %v751 = vmul.f32 %v733, %v748
    %v752 = vmul.f32 %v735, %v750
    %753 = vrot.lane.b32.xlu0 %v751, 17
    %v754 = vpop.permute.xlu0 %753
    %755 = vrot.lane.b32.xlu0 %v752, 17
    %v756 = vpop.permute.xlu0 %755
    %v757 = vsel %vm138, %v754, %v756
    %v758 = vsel %vm138, %v756, %v754
    %v759 = vmul.f32 %v758, %v145
    %v760 = vmul.f32 %v757, %v149
    %761 = vrot.lane.b32.xlu0 %v751, 16
    %v762 = vpop.permute.xlu0 %761
    %763 = vrot.lane.b32.xlu0 %v752, 16
    %v764 = vpop.permute.xlu0 %763
    %v765 = vsel %vm158, %v762, %v764
    %v766 = vsel %vm158, %v764, %v762
    %v767 = vmul.f32 %v766, %v165
    %v768 = vmul.f32 %v765, %v169
    %769 = vrot.lane.b32.xlu0 %v751, 15
    %v770 = vpop.permute.xlu0 %769
    %771 = vrot.lane.b32.xlu0 %v752, 15
    %v772 = vpop.permute.xlu0 %771
    %v773 = vsel %vm178, %v770, %v772
    %v774 = vsel %vm178, %v772, %v770
    %v775 = vmul.f32 %v774, %v185
    %v776 = vmul.f32 %v773, %v189
    %777 = vrot.lane.b32.xlu0 %v751, 1
    %v778 = vpop.permute.xlu0 %777
    %779 = vrot.lane.b32.xlu0 %v752, 1
    %v780 = vpop.permute.xlu0 %779
    %v781 = vsel %vm198, %v778, %v780
    %v782 = vsel %vm198, %v780, %v778
    %v783 = vmul.f32 %v782, %v205
    %v784 = vmul.f32 %v781, %v209
    %785 = vrot.lane.b32.xlu0 %v751, 127
    %v786 = vpop.permute.xlu0 %785
    %787 = vrot.lane.b32.xlu0 %v752, 127
    %v788 = vpop.permute.xlu0 %787
    %v789 = vsel %vm218, %v786, %v788
    %v790 = vsel %vm218, %v788, %v786
    %v791 = vmul.f32 %v789, %v225
    %v792 = vmul.f32 %v790, %v229
    %793 = vrot.lane.b32.xlu0 %v751, 113
    %v794 = vpop.permute.xlu0 %793
    %795 = vrot.lane.b32.xlu0 %v752, 113
    %v796 = vpop.permute.xlu0 %795
    %v797 = vsel %vm238, %v794, %v796
    %v798 = vsel %vm238, %v796, %v794
    %v799 = vmul.f32 %v797, %v245
    %v800 = vmul.f32 %v798, %v249
    %801 = vrot.lane.b32.xlu0 %v751, 112
    %v802 = vpop.permute.xlu0 %801
    %803 = vrot.lane.b32.xlu0 %v752, 112
    %v804 = vpop.permute.xlu0 %803
    %v805 = vsel %vm258, %v802, %v804
    %v806 = vsel %vm258, %v804, %v802
    %v807 = vmul.f32 %v805, %v265
    %v808 = vmul.f32 %v806, %v269
    %809 = vrot.lane.b32.xlu0 %v751, 111
    %v810 = vpop.permute.xlu0 %809
    %811 = vrot.lane.b32.xlu0 %v752, 111
    %v812 = vpop.permute.xlu0 %811
    %v813 = vsel %vm278, %v810, %v812
    %v814 = vsel %vm278, %v812, %v810
    %v815 = vmul.f32 %v813, %v285
    %v816 = vmul.f32 %v814, %v289
    %v817 = vpack.c.bf16 %v767, %v759
    %v818 = vpack.c.bf16 %v768, %v760
    %v819 = vpack.c.bf16 %v783, %v775
    %v820 = vpack.c.bf16 %v784, %v776
    %v821 = vpack.c.bf16 %v791, %v751
    %v822 = vpack.c.bf16 %v792, %v752
    %v823 = vpack.c.bf16 %v807, %v799
    %v824 = vpack.c.bf16 %v808, %v800
    %v825 = vpack.c.bf16 %v815, %v815
    %v826 = vpack.c.bf16 %v816, %v816
    %v828 = vsel %vm85, %v825, 0
    %v831 = vsel %vm85, %v826, 0
    %833 = vmatprep.subr.bf16.mxu0 %v818
    %834 = vmatpush1.bf16.msra.mxu0 %v817
    %835 = vmatprep.subr.bf16.mxu0 %v820
    %836 = vmatpush1.bf16.msra.mxu0 %v819
    %837 = vmatprep.subr.bf16.mxu0 %v822
    %838 = vmatpush1.bf16.msra.mxu0 %v821
    %839 = vmatprep.subr.bf16.mxu0 %v824
    %840 = vmatpush1.bf16.msra.mxu0 %v823
    %841 = vmatprep.subr.bf16.mxu0 %v831
    %842 = vmatpush1.bf16.msra.mxu0 %v828
    %843 = vmatprep.subr.bf16.mxu0 0
    %844 = vmatpush1.bf16.msra.mxu0 0
    %845 = vmatprep.subr.bf16.mxu0 0
    %846 = vmatpush1.bf16.msra.mxu0 0
    %847 = vmatprep.subr.bf16.mxu0 0
    %848 = vmatpush1.bf16.msra.mxu0 0
    %849 = vmatprep.subr.bf16.mxu0 0
    %850 = vmatpush1.bf16.msra.mxu0 0
    %851 = vmatprep.subr.bf16.mxu0 0
    %852 = vmatpush1.bf16.msra.mxu0 0
    %853 = vmatprep.subr.bf16.mxu0 0
    %854 = vmatpush1.bf16.msra.mxu0 0
    %855 = vmatprep.subr.bf16.mxu0 0
    %856 = vmatpush1.bf16.msra.mxu0 0
    %857 = vmatprep.subr.bf16.mxu0 0
    %858 = vmatpush1.bf16.msra.mxu0 0
    %859 = vmatprep.subr.bf16.mxu0 0
    %860 = vmatpush1.bf16.msra.mxu0 0
    %861 = vmatprep.subr.bf16.mxu0 0
    %862 = vmatpush1.bf16.msra.mxu0 0
    %863 = vmatprep.subr.bf16.mxu0 0
    %864 = vmatpush1.bf16.msra.mxu0 0
    %865 = vmatprep.mubr.bf16.mxu0 0
    %866 = vmatmul.mubr.bf16.gmra.mrb[0].mxu0 %v474
    %v867 = vpop.f32.mrb[0].mxu0
    %v868 = vadd.f32 %v79, %v867
    %v869 = vpop.f32.mrb[0].mxu0
    %v870 = vadd.f32 %v79, %v869
    %v871 = vpop.f32.mrb[0].mxu0
    %v872 = vpop.f32.mrb[0].mxu0
    %873 = vdwg.mxu0
    %v874 = vxor.u32 %v868, 2147483648
    %v875 = vxor.u32 %v870, 2147483648
    %v876 = vmul.f32 %v874, 1.442695
    %v877 = vpow.pop %v876
    %v878 = vmul.f32 %v875, 1.442695
    %v879 = vpow.pop %v878
    %v880 = vadd.f32 %v877, 1.0
    %v881 = vadd.f32 %v879, 1.0
    %v882 = vrcp.pop %v880
    %v883 = vmul.f32 1.0, %v882
    %v884 = vrcp.pop %v881
    %v885 = vmul.f32 1.0, %v884
    %v886 = vmul.f32 %v868, %v883
    %v887 = vmul.f32 %v870, %v885
    %s888 = scalar_lea.vmem [#allocation7], 16
    %889 = vst [vmem:[%s888] sm:$0xff] %v886
    %890 = vst [vmem:[%s888 + $0x8] sm:$0xff] %v887
    // Predicated region
    $region42: #{tpu_custom_call.1} parent=1 // pred_check
      _
    $region43: #{tpu_custom_call.1} parent=1 // pred_check_branch
      %892 = sbr.rel (0) target = $region45
    $region44: #{tpu_custom_call.1} parent=1 // pred_region
      %s894 = ssub.s32 512, 512
      %895 = vsyncadd [#allocation4], %s894
      %s896 = sshll.u32 [#allocation7], 4
      %s897 = int_to_ptr.vmem [resolvable:$true] %s896
      %902 = dma.vmem_to_hbm [thread:$0]  %s897, 512, %s8, [#allocation4], 256, 256, 16
    $region45: #{tpu_custom_call.1} parent=1 // pred_fallthru
      _
    // Predicated region
    $region46: #{tpu_custom_call.1} parent=1 // pred_check
      _
    $region47: #{tpu_custom_call.1} parent=1 // pred_check_branch
      %904 = sbr.rel (0) target = $region49
    $region48: #{tpu_custom_call.1} parent=1 // pred_region
      %905 = dma.done [#allocation4], 512
    $region49: #{tpu_custom_call.1} parent=1 // pred_fallthru
      _
    %906 = vsyncpa [#allocation3], 1
    %907 = vsyncpa [#allocation6], 1
    %908 = vsyncpa [#allocation4], 1

</llo_original>
